<compile_context>
chip_gen: v7x
topology: tpu7x:2x2x1
jax: 0.10.0
libtpu: 0.0.40
codegen_flags: <defaults>
</compile_context>

<pallas_src>
import math

import jax
import jax.numpy as jnp
from jax.experimental import pallas as pl
from jax.experimental.pallas import tpu as pltpu

LOG_SIG_MAX = 2.0
LOG_SIG_MIN = -20.0
STD_MIN = math.exp(LOG_SIG_MIN)
STD_MAX = math.exp(LOG_SIG_MAX)


def _ensemble_heads_kernel(obs_ref, *refs):
    """refs = (W1, b1, W2, b2, ..., W_head, b_head, heads_out_ref).

    For each of the E_BLK ensemble members in this grid step, run the policy
    MLP on the shared obs and write [mean | std] (std = exp(clamped log_std))
    into heads_out_ref[e].  Dots use bf16 inputs + f32 accumulation (MXU);
    bias-add / ReLU / clamp / exp run in f32 (VPU / EUP).
    """
    heads_ref = refs[-1]
    wb_refs = refs[:-1]
    n_layers = len(wb_refs) // 2            # hidden layers + fused head layer
    e_blk, batch, two_a = heads_ref.shape
    act_dim = two_a // 2

    # Cast the shared observation once per grid step (hoisted out of the loop).
    obs_b = obs_ref[...].astype(jnp.bfloat16)
    # Lane mask: mean lanes are [0, A), log_std lanes are [A, 2A).
    col = jax.lax.broadcasted_iota(jnp.int32, (batch, two_a), 1)
    is_mean = col < act_dim

    for e in range(e_blk):                  # small, statically unrolled ->
        h = obs_b                           # back-to-back MXU pushes
        for li in range(n_layers):
            w = wb_refs[2 * li][e]          # (d_in, d_out), bf16
            b = wb_refs[2 * li + 1][e]      # (1, d_out), f32 (broadcast over B)
            z = jnp.dot(h, w, preferred_element_type=jnp.float32) + b
            if li < n_layers - 1:
                h = jnp.maximum(z, 0.0).astype(jnp.bfloat16)  # f32 relu, bf16 at dot
            else:
                heads = z                   # (batch, 2A) f32: [mean | log_std]
        # exp(clamp(.)) applied to all lanes (EUP slack is free) and selected
        # per lane -> no lane slicing / concatenation inside this kernel.
        std = jnp.exp(jnp.clip(heads, LOG_SIG_MIN, LOG_SIG_MAX))
        heads_ref[e] = jnp.where(is_mean, heads, std)


def _mixture_kernel(heads_ref, mean_ref, std_ref):
    """Moment-matched mixture of the E per-member Gaussians (single step)."""
    heads = heads_ref[...]                              # (E, B, 2A) f32
    act_dim = mean_ref.shape[-1]
    m = heads[:, :, :act_dim]                           # per-member means
    s = heads[:, :, act_dim:]                           # per-member stds
    avg_mean = jnp.mean(m, axis=0)                      # (B, A)
    avg_sq = jnp.mean(m * m + s * s, axis=0)
    avg_var = jnp.maximum(avg_sq - avg_mean * avg_mean, 0.0)   # guard round-off
    avg_std = jnp.clip(jnp.sqrt(avg_var), STD_MIN, STD_MAX)
    mean_ref[...] = avg_mean
    std_ref[...] = avg_std


def parallel_tanh_gaussian_policy_forward(obs, params, *, e_blk=2):
    """obs: (B, obs_dim) f32.  params: list of (W, b) per layer with
    W: (E, d_in, d_out) (bf16, see prepare_device_params) and b: (E, 1, d_out)
    (f32); the last layer is the fused mean|log_std head (d_out = 2*act_dim).
    Returns (avg_mean, avg_std), each (B, act_dim) f32."""
    batch, obs_dim = obs.shape
    w_head, _ = params[-1]
    ensemble = w_head.shape[0]
    two_a = w_head.shape[-1]
    act_dim = two_a // 2
    assert ensemble % e_blk == 0, "e_blk must divide the ensemble size"
    num_blocks = ensemble // e_blk

    # NOTE: every block's last two dims equal the full array dims, so the
    # (8, 128) divisibility rule is satisfied via the full-extent exception.
    # Tiling d_in / H / B later requires (8, 128)-multiples.
    in_specs = [pl.BlockSpec((batch, obs_dim), lambda g: (0, 0))]
    flat_params = []
    for (w, b) in params:
        in_specs.append(pl.BlockSpec((e_blk,) + w.shape[1:], lambda g: (g, 0, 0)))
        in_specs.append(pl.BlockSpec((e_blk,) + b.shape[1:], lambda g: (g, 0, 0)))
        flat_params += [w, b]

    # Stage 1: per-member [mean | std] heads, E_BLK members per grid step.
    heads = pl.pallas_call(
        _ensemble_heads_kernel,
        out_shape=jax.ShapeDtypeStruct((ensemble, batch, two_a), jnp.float32),
        grid_spec=pltpu.PrefetchScalarGridSpec(
            num_scalar_prefetch=0,
            grid=(num_blocks,),
            in_specs=in_specs,
            out_specs=pl.BlockSpec((e_blk, batch, two_a), lambda g: (g, 0, 0)),
        ),
        compiler_params=pltpu.CompilerParams(
            # Ensemble blocks are independent -> v7x can split them across
            # its two TensorCores.
            dimension_semantics=("parallel",),
        ),
    )(obs, *flat_params)

    # Stage 2: tiny moment-matching reduction over the ensemble, one step,
    # everything resident in VMEM.
    avg_mean, avg_std = pl.pallas_call(
        _mixture_kernel,
        out_shape=(
            jax.ShapeDtypeStruct((batch, act_dim), jnp.float32),
            jax.ShapeDtypeStruct((batch, act_dim), jnp.float32),
        ),
        grid=(1,),
        in_specs=[pl.BlockSpec((ensemble, batch, two_a), lambda i: (0, 0, 0))],
        out_specs=(
            pl.BlockSpec((batch, act_dim), lambda i: (0, 0)),
            pl.BlockSpec((batch, act_dim), lambda i: (0, 0)),
        ),
        compiler_params=pltpu.CompilerParams(
            dimension_semantics=("arbitrary",),
        ),
    )(heads)
    return avg_mean, avg_std


def init_params(key, ensemble, obs_dim, hidden_dim, num_hidden_layers, act_dim,
                hidden_b_init=0.1, init_w=1e-3):
    """rlkit-style inits, one weight set per ensemble member.

    Hidden layers: fanin_init U(-1/sqrt(fan_in), 1/sqrt(fan_in)), bias=0.1.
    Head: mean and log_std heads fused along the output dim, both U(-init_w, init_w)
    like rlkit's last_fc / last_fc_log_std.
    """
    params = []
    d_in = obs_dim
    for _ in range(num_hidden_layers):
        key, wk = jax.random.split(key)
        bound = 1.0 / math.sqrt(d_in)
        w = jax.random.uniform(wk, (ensemble, d_in, hidden_dim),
                               minval=-bound, maxval=bound, dtype=jnp.float32)
        b = jnp.full((ensemble, 1, hidden_dim), hidden_b_init, dtype=jnp.float32)
        params.append((w, b))
        d_in = hidden_dim
    key, wk, bk = jax.random.split(key, 3)
    w = jax.random.uniform(wk, (ensemble, d_in, 2 * act_dim),
                           minval=-init_w, maxval=init_w, dtype=jnp.float32)
    b = jax.random.uniform(bk, (ensemble, 1, 2 * act_dim),
                           minval=-init_w, maxval=init_w, dtype=jnp.float32)
    params.append((w, b))
    return params


def prepare_device_params(params):
    """One-time weight prep: store W as bf16 in HBM (half the DMA bytes,
    MXU-native on v6e/v7x); biases stay f32 (bias-add / ReLU run in f32)."""
    return [(w.astype(jnp.bfloat16), b) for (w, b) in params]


def reference_forward(obs, params):
    """Pure-JAX reference with the same bf16-input / f32-accumulate numerics."""
    act_dim = params[-1][0].shape[-1] // 2
    n = len(params)
    h = obs.astype(jnp.bfloat16)
    heads = None
    for i, (w, b) in enumerate(params):
        eq = "bj,ejk->ebk" if i == 0 else "ebj,ejk->ebk"
        z = jnp.einsum(eq, h, w.astype(jnp.bfloat16),
                       preferred_element_type=jnp.float32) + b
        if i < n - 1:
            h = jnp.maximum(z, 0.0).astype(jnp.bfloat16)
        else:
            heads = z
    mean = heads[..., :act_dim]
    std = jnp.exp(jnp.clip(heads[..., act_dim:], LOG_SIG_MIN, LOG_SIG_MAX))
    avg_mean = mean.mean(axis=0)
    avg_var = (mean ** 2 + std ** 2).mean(axis=0) - avg_mean ** 2
    avg_std = jnp.clip(jnp.sqrt(jnp.maximum(avg_var, 0.0)), STD_MIN, STD_MAX)
    return avg_mean, avg_std


if __name__ == "__main__":
    # Small shapes consistent with the module (ensemble of Gaussian policies).
    ensemble_size = 4        # number of policies
    e_blk = 2                # members fused per grid step -> grid=(2,), "parallel"
    batch = 8
    obs_dim = 16
    act_dim = 6
    hidden_dim = 32
    num_hidden_layers = 2

    key = jax.random.PRNGKey(0)
    kobs, kp = jax.random.split(key)
    obs = jax.random.normal(kobs, (batch, obs_dim), dtype=jnp.float32)

    params = init_params(kp, ensemble_size, obs_dim, hidden_dim,
                         num_hidden_layers, act_dim)
    dev_params = prepare_device_params(params)

    avg_mean, avg_std = parallel_tanh_gaussian_policy_forward(
        obs, dev_params, e_blk=e_blk)
    avg_mean = jax.block_until_ready(avg_mean)
    avg_std = jax.block_until_ready(avg_std)

    ref_mean, ref_std = reference_forward(obs, dev_params)
    assert avg_mean.shape == (batch, act_dim)
    assert avg_std.shape == (batch, act_dim)
    assert bool(jnp.all(avg_std >= STD_MIN)) and bool(jnp.all(avg_std <= STD_MAX))
    assert jnp.allclose(avg_mean, ref_mean, atol=1e-4, rtol=1e-3), \
        float(jnp.max(jnp.abs(avg_mean - ref_mean)))
    assert jnp.allclose(avg_std, ref_std, atol=1e-4, rtol=1e-3), \
        float(jnp.max(jnp.abs(avg_std - ref_std)))

    # TODO(synk): TanhNormal sampling / log_prob (tanh squash + Jacobian) is not
    # part of forward() and is left to the caller.
    print("KERNEL_OK")
</pallas_src>

<mosaic_0001>
module attributes {stable_mosaic.version = 11 : i64} {
  func.func @_ensemble_heads_kernel(%arg0: i32, %arg1: memref<8x16xf32, #tpu.memory_space<vmem>>, %arg2: memref<2x16x32xbf16, #tpu.memory_space<vmem>>, %arg3: memref<2x1x32xf32, #tpu.memory_space<vmem>>, %arg4: memref<2x32x32xbf16, #tpu.memory_space<vmem>>, %arg5: memref<2x1x32xf32, #tpu.memory_space<vmem>>, %arg6: memref<2x32x12xbf16, #tpu.memory_space<vmem>>, %arg7: memref<2x1x12xf32, #tpu.memory_space<vmem>>, %arg8: memref<2x8x12xf32, #tpu.memory_space<vmem>>) attributes {dimension_semantics = [#tpu.dimension_semantics<parallel>], iteration_bounds = array<i64: 2>, scalar_prefetch = 0 : i64, scratch_operands = 0 : i64, tpu.core_type = #tpu.core_type<tc>, window_params = [{pipeline_mode = #tpu.pipeline_mode<synchronous>, transform_indices = @transform_0, window_bounds = array<i64: 8, 16>}, {transform_indices = @transform_1, window_bounds = array<i64: 2, 16, 32>}, {transform_indices = @transform_2, window_bounds = array<i64: 2, 1, 32>}, {transform_indices = @transform_3, window_bounds = array<i64: 2, 32, 32>}, {transform_indices = @transform_4, window_bounds = array<i64: 2, 1, 32>}, {transform_indices = @transform_5, window_bounds = array<i64: 2, 32, 12>}, {transform_indices = @transform_6, window_bounds = array<i64: 2, 1, 12>}, {transform_indices = @transform_7, window_bounds = array<i64: 2, 8, 12>}]} {
    %c0 = arith.constant 0 : index
    %c0_0 = arith.constant 0 : index
    %0 = vector.load %arg1[%c0, %c0_0] : memref<8x16xf32, #tpu.memory_space<vmem>>, vector<8x16xf32>
    %1 = arith.truncf %0 : vector<8x16xf32> to vector<8x16xbf16>
    %2 = tpu.iota {dimensions = array<i32: 1>} : vector<8x12xi32>
    %c6_i32 = arith.constant 6 : i32
    %3 = vector.broadcast %c6_i32 : i32 to vector<8x12xi32>
    %4 = arith.cmpi slt, %2, %3 : vector<8x12xi32>
    %c0_1 = arith.constant 0 : index
    %c0_2 = arith.constant 0 : index
    %c0_3 = arith.constant 0 : index
    %5 = vector.load %arg2[%c0_1, %c0_2, %c0_3] : memref<2x16x32xbf16, #tpu.memory_space<vmem>>, vector<1x16x32xbf16>
    %6 = vector.shape_cast %5 : vector<1x16x32xbf16> to vector<16x32xbf16>
    %c0_4 = arith.constant 0 : index
    %c0_5 = arith.constant 0 : index
    %c0_6 = arith.constant 0 : index
    %7 = vector.load %arg3[%c0_4, %c0_5, %c0_6] : memref<2x1x32xf32, #tpu.memory_space<vmem>>, vector<1x1x32xf32>
    %8 = vector.shape_cast %7 : vector<1x1x32xf32> to vector<1x32xf32>
    %cst = arith.constant dense<0.000000e+00> : vector<8x32xf32>
    %9 = tpu.matmul %1, %6, %cst {dimension_numbers = #tpu.dot_dimension_numbers<[1], [0], [0], [1], [0, 0, 1, 1], [], []>} : vector<8x16xbf16>, vector<16x32xbf16>, vector<8x32xf32> -> vector<8x32xf32>
    %10 = vector.broadcast %8 : vector<1x32xf32> to vector<8x32xf32>
    %11 = arith.addf %9, %10 : vector<8x32xf32>
    %cst_7 = arith.constant 0.000000e+00 : f32
    %12 = vector.broadcast %cst_7 : f32 to vector<8x32xf32>
    %13 = arith.maximumf %11, %12 : vector<8x32xf32>
    %14 = arith.truncf %13 : vector<8x32xf32> to vector<8x32xbf16>
    %c0_8 = arith.constant 0 : index
    %c0_9 = arith.constant 0 : index
    %c0_10 = arith.constant 0 : index
    %15 = vector.load %arg4[%c0_8, %c0_9, %c0_10] : memref<2x32x32xbf16, #tpu.memory_space<vmem>>, vector<1x32x32xbf16>
    %16 = vector.shape_cast %15 : vector<1x32x32xbf16> to vector<32x32xbf16>
    %c0_11 = arith.constant 0 : index
    %c0_12 = arith.constant 0 : index
    %c0_13 = arith.constant 0 : index
    %17 = vector.load %arg5[%c0_11, %c0_12, %c0_13] : memref<2x1x32xf32, #tpu.memory_space<vmem>>, vector<1x1x32xf32>
    %18 = vector.shape_cast %17 : vector<1x1x32xf32> to vector<1x32xf32>
    %cst_14 = arith.constant dense<0.000000e+00> : vector<8x32xf32>
    %19 = tpu.matmul %14, %16, %cst_14 {dimension_numbers = #tpu.dot_dimension_numbers<[1], [0], [0], [1], [0, 0, 1, 1], [], []>} : vector<8x32xbf16>, vector<32x32xbf16>, vector<8x32xf32> -> vector<8x32xf32>
    %20 = vector.broadcast %18 : vector<1x32xf32> to vector<8x32xf32>
    %21 = arith.addf %19, %20 : vector<8x32xf32>
    %cst_15 = arith.constant 0.000000e+00 : f32
    %22 = vector.broadcast %cst_15 : f32 to vector<8x32xf32>
    %23 = arith.maximumf %21, %22 : vector<8x32xf32>
    %24 = arith.truncf %23 : vector<8x32xf32> to vector<8x32xbf16>
    %c0_16 = arith.constant 0 : index
    %c0_17 = arith.constant 0 : index
    %c0_18 = arith.constant 0 : index
    %25 = vector.load %arg6[%c0_16, %c0_17, %c0_18] : memref<2x32x12xbf16, #tpu.memory_space<vmem>>, vector<1x32x12xbf16>
    %26 = vector.shape_cast %25 : vector<1x32x12xbf16> to vector<32x12xbf16>
    %c0_19 = arith.constant 0 : index
    %c0_20 = arith.constant 0 : index
    %c0_21 = arith.constant 0 : index
    %27 = vector.load %arg7[%c0_19, %c0_20, %c0_21] : memref<2x1x12xf32, #tpu.memory_space<vmem>>, vector<1x1x12xf32>
    %28 = vector.shape_cast %27 : vector<1x1x12xf32> to vector<1x12xf32>
    %cst_22 = arith.constant dense<0.000000e+00> : vector<8x12xf32>
    %29 = tpu.matmul %24, %26, %cst_22 {dimension_numbers = #tpu.dot_dimension_numbers<[1], [0], [0], [1], [0, 0, 1, 1], [], []>} : vector<8x32xbf16>, vector<32x12xbf16>, vector<8x12xf32> -> vector<8x12xf32>
    %30 = vector.broadcast %28 : vector<1x12xf32> to vector<8x12xf32>
    %31 = arith.addf %29, %30 : vector<8x12xf32>
    %cst_23 = arith.constant -2.000000e+01 : f32
    %cst_24 = arith.constant 2.000000e+00 : f32
    %32 = vector.broadcast %cst_23 : f32 to vector<8x12xf32>
    %33 = arith.maximumf %32, %31 : vector<8x12xf32>
    %34 = vector.broadcast %cst_24 : f32 to vector<8x12xf32>
    %35 = arith.minimumf %34, %33 : vector<8x12xf32>
    %36 = math.exp %35 : vector<8x12xf32>
    %37 = arith.select %4, %31, %36 : vector<8x12xi1>, vector<8x12xf32>
    %c0_25 = arith.constant 0 : index
    %c0_26 = arith.constant 0 : index
    %c0_27 = arith.constant 0 : index
    %38 = vector.load %arg8[%c0_25, %c0_26, %c0_27] : memref<2x8x12xf32, #tpu.memory_space<vmem>>, vector<1x8x12xf32>
    %39 = vector.shape_cast %38 : vector<1x8x12xf32> to vector<8x12xf32>
    %40 = vector.shape_cast %37 : vector<8x12xf32> to vector<1x8x12xf32>
    tpu.vector_store %arg8[%c0_25, %c0_26, %c0_27], %40 {strides = array<i32>} : memref<2x8x12xf32, #tpu.memory_space<vmem>>, vector<1x8x12xf32>,
    %c1 = arith.constant 1 : index
    %c0_28 = arith.constant 0 : index
    %c0_29 = arith.constant 0 : index
    %41 = vector.load %arg2[%c1, %c0_28, %c0_29] : memref<2x16x32xbf16, #tpu.memory_space<vmem>>, vector<1x16x32xbf16>
    %42 = vector.shape_cast %41 : vector<1x16x32xbf16> to vector<16x32xbf16>
    %c1_30 = arith.constant 1 : index
    %c0_31 = arith.constant 0 : index
    %c0_32 = arith.constant 0 : index
    %43 = vector.load %arg3[%c1_30, %c0_31, %c0_32] : memref<2x1x32xf32, #tpu.memory_space<vmem>>, vector<1x1x32xf32>
    %44 = vector.shape_cast %43 : vector<1x1x32xf32> to vector<1x32xf32>
    %cst_33 = arith.constant dense<0.000000e+00> : vector<8x32xf32>
    %45 = tpu.matmul %1, %42, %cst_33 {dimension_numbers = #tpu.dot_dimension_numbers<[1], [0], [0], [1], [0, 0, 1, 1], [], []>} : vector<8x16xbf16>, vector<16x32xbf16>, vector<8x32xf32> -> vector<8x32xf32>
    %46 = vector.broadcast %44 : vector<1x32xf32> to vector<8x32xf32>
    %47 = arith.addf %45, %46 : vector<8x32xf32>
    %cst_34 = arith.constant 0.000000e+00 : f32
    %48 = vector.broadcast %cst_34 : f32 to vector<8x32xf32>
    %49 = arith.maximumf %47, %48 : vector<8x32xf32>
    %50 = arith.truncf %49 : vector<8x32xf32> to vector<8x32xbf16>
    %c1_35 = arith.constant 1 : index
    %c0_36 = arith.constant 0 : index
    %c0_37 = arith.constant 0 : index
    %51 = vector.load %arg4[%c1_35, %c0_36, %c0_37] : memref<2x32x32xbf16, #tpu.memory_space<vmem>>, vector<1x32x32xbf16>
    %52 = vector.shape_cast %51 : vector<1x32x32xbf16> to vector<32x32xbf16>
    %c1_38 = arith.constant 1 : index
    %c0_39 = arith.constant 0 : index
    %c0_40 = arith.constant 0 : index
    %53 = vector.load %arg5[%c1_38, %c0_39, %c0_40] : memref<2x1x32xf32, #tpu.memory_space<vmem>>, vector<1x1x32xf32>
    %54 = vector.shape_cast %53 : vector<1x1x32xf32> to vector<1x32xf32>
    %cst_41 = arith.constant dense<0.000000e+00> : vector<8x32xf32>
    %55 = tpu.matmul %50, %52, %cst_41 {dimension_numbers = #tpu.dot_dimension_numbers<[1], [0], [0], [1], [0, 0, 1, 1], [], []>} : vector<8x32xbf16>, vector<32x32xbf16>, vector<8x32xf32> -> vector<8x32xf32>
    %56 = vector.broadcast %54 : vector<1x32xf32> to vector<8x32xf32>
    %57 = arith.addf %55, %56 : vector<8x32xf32>
    %cst_42 = arith.constant 0.000000e+00 : f32
    %58 = vector.broadcast %cst_42 : f32 to vector<8x32xf32>
    %59 = arith.maximumf %57, %58 : vector<8x32xf32>
    %60 = arith.truncf %59 : vector<8x32xf32> to vector<8x32xbf16>
    %c1_43 = arith.constant 1 : index
    %c0_44 = arith.constant 0 : index
    %c0_45 = arith.constant 0 : index
    %61 = vector.load %arg6[%c1_43, %c0_44, %c0_45] : memref<2x32x12xbf16, #tpu.memory_space<vmem>>, vector<1x32x12xbf16>
    %62 = vector.shape_cast %61 : vector<1x32x12xbf16> to vector<32x12xbf16>
    %c1_46 = arith.constant 1 : index
    %c0_47 = arith.constant 0 : index
    %c0_48 = arith.constant 0 : index
    %63 = vector.load %arg7[%c1_46, %c0_47, %c0_48] : memref<2x1x12xf32, #tpu.memory_space<vmem>>, vector<1x1x12xf32>
    %64 = vector.shape_cast %63 : vector<1x1x12xf32> to vector<1x12xf32>
    %cst_49 = arith.constant dense<0.000000e+00> : vector<8x12xf32>
    %65 = tpu.matmul %60, %62, %cst_49 {dimension_numbers = #tpu.dot_dimension_numbers<[1], [0], [0], [1], [0, 0, 1, 1], [], []>} : vector<8x32xbf16>, vector<32x12xbf16>, vector<8x12xf32> -> vector<8x12xf32>
    %66 = vector.broadcast %64 : vector<1x12xf32> to vector<8x12xf32>
    %67 = arith.addf %65, %66 : vector<8x12xf32>
    %cst_50 = arith.constant -2.000000e+01 : f32
    %cst_51 = arith.constant 2.000000e+00 : f32
    %68 = vector.broadcast %cst_50 : f32 to vector<8x12xf32>
    %69 = arith.maximumf %68, %67 : vector<8x12xf32>
    %70 = vector.broadcast %cst_51 : f32 to vector<8x12xf32>
    %71 = arith.minimumf %70, %69 : vector<8x12xf32>
    %72 = math.exp %71 : vector<8x12xf32>
    %73 = arith.select %4, %67, %72 : vector<8x12xi1>, vector<8x12xf32>
    %c1_52 = arith.constant 1 : index
    %c0_53 = arith.constant 0 : index
    %c0_54 = arith.constant 0 : index
    %74 = vector.load %arg8[%c1_52, %c0_53, %c0_54] : memref<2x8x12xf32, #tpu.memory_space<vmem>>, vector<1x8x12xf32>
    %75 = vector.shape_cast %74 : vector<1x8x12xf32> to vector<8x12xf32>
    %76 = vector.shape_cast %73 : vector<8x12xf32> to vector<1x8x12xf32>
    tpu.vector_store %arg8[%c1_52, %c0_53, %c0_54], %76 {strides = array<i32>} : memref<2x8x12xf32, #tpu.memory_space<vmem>>, vector<1x8x12xf32>,
    return
  }
  func.func @transform_0(%arg0: i32) -> (i32, i32) {
    %c0_i32 = arith.constant 0 : i32
    %c0_i32_0 = arith.constant 0 : i32
    %c0_i32_1 = arith.constant 0 : i32
    return %c0_i32, %c0_i32_0 : i32, i32
  }
  func.func @transform_1(%arg0: i32) -> (i32, i32, i32) {
    %c0_i32 = arith.constant 0 : i32
    %c0_i32_0 = arith.constant 0 : i32
    %c0_i32_1 = arith.constant 0 : i32
    return %arg0, %c0_i32, %c0_i32_0 : i32, i32, i32
  }
  func.func @transform_2(%arg0: i32) -> (i32, i32, i32) {
    %c0_i32 = arith.constant 0 : i32
    %c0_i32_0 = arith.constant 0 : i32
    %c0_i32_1 = arith.constant 0 : i32
    return %arg0, %c0_i32, %c0_i32_0 : i32, i32, i32
  }
  func.func @transform_3(%arg0: i32) -> (i32, i32, i32) {
    %c0_i32 = arith.constant 0 : i32
    %c0_i32_0 = arith.constant 0 : i32
    %c0_i32_1 = arith.constant 0 : i32
    return %arg0, %c0_i32, %c0_i32_0 : i32, i32, i32
  }
  func.func @transform_4(%arg0: i32) -> (i32, i32, i32) {
    %c0_i32 = arith.constant 0 : i32
    %c0_i32_0 = arith.constant 0 : i32
    %c0_i32_1 = arith.constant 0 : i32
    return %arg0, %c0_i32, %c0_i32_0 : i32, i32, i32
  }
  func.func @transform_5(%arg0: i32) -> (i32, i32, i32) {
    %c0_i32 = arith.constant 0 : i32
    %c0_i32_0 = arith.constant 0 : i32
    %c0_i32_1 = arith.constant 0 : i32
    return %arg0, %c0_i32, %c0_i32_0 : i32, i32, i32
  }
  func.func @transform_6(%arg0: i32) -> (i32, i32, i32) {
    %c0_i32 = arith.constant 0 : i32
    %c0_i32_0 = arith.constant 0 : i32
    %c0_i32_1 = arith.constant 0 : i32
    return %arg0, %c0_i32, %c0_i32_0 : i32, i32, i32
  }
  func.func @transform_7(%arg0: i32) -> (i32, i32, i32) {
    %c0_i32 = arith.constant 0 : i32
    %c0_i32_0 = arith.constant 0 : i32
    %c0_i32_1 = arith.constant 0 : i32
    return %arg0, %c0_i32, %c0_i32_0 : i32, i32, i32
  }
}

</mosaic_0001>

<llo_original>
// kernel: tpu_custom_call.1
$region0: #{tpu_custom_call.1}
  #allocation0 [shape = 'u32[]', space=smem, size = 0x4, offset = 0x4, fixed_abs, tag = 'smem constant byte address 0x4 - core index']
  #allocation1 [shape = 'u32[144,128]{1,0:T(1,128)}', space=vmem, size = 0x12000, scoped, tag = 'internal scratch']
  %s0 = inlined_call_operand.hbm [shape: f32[8,16], index: 0, kind: input, shape index: {}]
  %s1 = inlined_call_operand.vmem [shape: bf16[4,16,32], index: 1, kind: input, shape index: {}]
  %s2 = inlined_call_operand.hbm [shape: f32[4,1,32], index: 2, kind: input, shape index: {}]
  %s3 = inlined_call_operand.vmem [shape: bf16[4,32,32], index: 3, kind: input, shape index: {}]
  %s4 = inlined_call_operand.vmem [shape: f32[4,1,32], index: 4, kind: input, shape index: {}]
  %s5 = inlined_call_operand.vmem [shape: bf16[4,32,12], index: 5, kind: input, shape index: {}]
  %s6 = inlined_call_operand.vmem [shape: f32[4,1,12], index: 6, kind: input, shape index: {}]
  %s7 = inlined_call_operand.hbm [shape: f32[4,8,12], index: 7, kind: output, shape index: {}]
  %s8 = sld [smem:[#allocation0]]
  $region69: #{tpu_custom_call.1} parent=0
    _
  %s10 = ssub.s32 1, %s8
  %s11 = scalar_select 0, %s10, %s8
  $region1: #{tpu_custom_call.1} parent=0
    #allocation2 [shape = 'u8[4096]{0}', space=vmem, size = 0x1000, scoped, tag = 'input window, operand 0, single buffered']
    #allocation3 [shape = 's32[2]{0}', space=sflag, size = 0x8, scoped, tag = 'scoped memory for tpu_custom_call.1']
    #allocation4 [shape = 's32[2]{0}', space=sflag, size = 0x8, scoped, tag = 'scoped memory for tpu_custom_call.1']
    #allocation5 [shape = 'u8[2048]{0}', space=vmem, size = 0x800, scoped, tag = 'input window, operand 2']
    #allocation6 [shape = 's32[2]{0}', space=sflag, size = 0x8, scoped, tag = 'scoped memory for tpu_custom_call.1']
    #allocation7 [shape = 'u8[16384]{0}', space=vmem, size = 0x4000, scoped, tag = 'output window, operand 0']
    %12 = vsyncpa [#allocation3], 0
    %13 = vsyncpa [#allocation6], 0
    %s14 = scalar_lea.sflag [#allocation6], 1
    %15 = vsyncpa %s14, 0
    %16 = vsyncpa [#allocation4], 0
    %s17 = scalar_lea.sflag [#allocation4], 1
    %18 = vsyncpa %s17, 0
    loop: start=0, step=1, limit=4
    $region2: #{tpu_custom_call.1} parent=1 // loop_pre_header
      _
    $region3: #{tpu_custom_call.1} parent=1 // loop_header
      %s20 = sphi 0, %s24
      %p21 = scmp.ge.s32.totalorder %s20, 4
      %s28 = sphi 0, %s28
      %s30 = sphi 0, %s28
      %s31 = sphi 0, %s30
      %s45 = sphi 0, %s31
      %s51 = sphi 0, %s53
      %s54 = sphi 0, %s51
      %s55 = sphi 0, %s54
      %s71 = sphi 0, %s55
      %s77 = sphi 0, %s79
      %s80 = sphi 0, %s77
      %s81 = sphi 0, %s80
      %s97 = sphi 0, %s81
      %s103 = sphi 0, %s105
      %s106 = sphi 0, %s103
      %s107 = sphi 0, %s106
      %s123 = sphi 0, %s107
      %s129 = sphi 0, %s131
      %s132 = sphi 0, %s129
      %s133 = sphi 0, %s132
      %s149 = sphi 0, %s133
      %s155 = sphi 0, %s157
      %s158 = sphi 0, %s155
      %s159 = sphi 0, %s158
      %s175 = sphi 0, %s159
      %s181 = sphi 0, %s183
      %s184 = sphi 0, %s181
      %s185 = sphi 0, %s184
      %s201 = sphi 0, %s185
      %s207 = sphi 0, %s209
      %s210 = sphi 0, %s207
      %s211 = sphi 0, %s210
      %s227 = sphi 0, %s211
    $region4: #{tpu_custom_call.1} parent=1 // loop_header_branch
      %23 = sbr.rel (%p21) target = $region8
    $region5: #{tpu_custom_call.1} parent=1 // loop_body
      %s25 = ssub.s32 %s20, 1
      %s26 = ssub.s32 %s20, 2
      %s27 = sadd.s32 %s20, 1
      %s29 = sadd.s32 %s28, 1
      %p32 = scmp.eq.s32.totalorder %s20, 1
      %p33 = scmp.ne.s32.totalorder %s28, %s30
      %p34 = scmp.eq.s32.totalorder %s20, 0
      %p35 = por %p33, %p34
      %p36 = scmp.ne.s32.totalorder %s28, %s30
      %p37 = scmp.eq.s32.totalorder %s25, 1
      %p38 = por %p36, %p37
      %p39 = scmp.ne.s32.totalorder %s30, %s31
      %p40 = scmp.eq.s32.totalorder %s25, 0
      %p41 = por %p39, %p40
      %p42 = scmp.ne.s32.totalorder %s30, %s31
      %p43 = scmp.eq.s32.totalorder %s26, 1
      %p44 = por %p42, %p43
      %p46 = scmp.ne.s32.totalorder %s31, %s45
      %p47 = scmp.eq.s32.totalorder %s26, 0
      %p48 = por %p46, %p47
      %s49 = ssub.s32 %s20, %s27
      %p50 = scmp.eq.s32.totalorder %s49, 0
      %s52 = sadd.s32 %s51, 1
      %s53 = scalar_select %p50, %s51, %s52
      %p56 = pneg %p50
      %p57 = scmp.eq.s32.totalorder %s20, 1
      %p58 = por %p56, %p57
      %p59 = scmp.ne.s32.totalorder %s51, %s54
      %p60 = scmp.eq.s32.totalorder %s20, 0
      %p61 = por %p59, %p60
      %p62 = scmp.ne.s32.totalorder %s51, %s54
      %p63 = scmp.eq.s32.totalorder %s25, 1
      %p64 = por %p62, %p63
      %p65 = scmp.ne.s32.totalorder %s54, %s55
      %p66 = scmp.eq.s32.totalorder %s25, 0
      %p67 = por %p65, %p66
      %p68 = scmp.ne.s32.totalorder %s54, %s55
      %p69 = scmp.eq.s32.totalorder %s26, 1
      %p70 = por %p68, %p69
      %p72 = scmp.ne.s32.totalorder %s55, %s71
      %p73 = scmp.eq.s32.totalorder %s26, 0
      %p74 = por %p72, %p73
      %s75 = ssub.s32 %s20, %s27
      %p76 = scmp.eq.s32.totalorder %s75, 0
      %s78 = sadd.s32 %s77, 1
      %s79 = scalar_select %p76, %s77, %s78
      %p82 = pneg %p76
      %p83 = scmp.eq.s32.totalorder %s20, 1
      %p84 = por %p82, %p83
      %p85 = scmp.ne.s32.totalorder %s77, %s80
      %p86 = scmp.eq.s32.totalorder %s20, 0
      %p87 = por %p85, %p86
      %p88 = scmp.ne.s32.totalorder %s77, %s80
      %p89 = scmp.eq.s32.totalorder %s25, 1
      %p90 = por %p88, %p89
      %p91 = scmp.ne.s32.totalorder %s80, %s81
      %p92 = scmp.eq.s32.totalorder %s25, 0
      %p93 = por %p91, %p92
      %p94 = scmp.ne.s32.totalorder %s80, %s81
      %p95 = scmp.eq.s32.totalorder %s26, 1
      %p96 = por %p94, %p95
      %p98 = scmp.ne.s32.totalorder %s81, %s97
      %p99 = scmp.eq.s32.totalorder %s26, 0
      %p100 = por %p98, %p99
      %s101 = ssub.s32 %s20, %s27
      %p102 = scmp.eq.s32.totalorder %s101, 0
      %s104 = sadd.s32 %s103, 1
      %s105 = scalar_select %p102, %s103, %s104
      %p108 = pneg %p102
      %p109 = scmp.eq.s32.totalorder %s20, 1
      %p110 = por %p108, %p109
      %p111 = scmp.ne.s32.totalorder %s103, %s106
      %p112 = scmp.eq.s32.totalorder %s20, 0
      %p113 = por %p111, %p112
      %p114 = scmp.ne.s32.totalorder %s103, %s106
      %p115 = scmp.eq.s32.totalorder %s25, 1
      %p116 = por %p114, %p115
      %p117 = scmp.ne.s32.totalorder %s106, %s107
      %p118 = scmp.eq.s32.totalorder %s25, 0
      %p119 = por %p117, %p118
      %p120 = scmp.ne.s32.totalorder %s106, %s107
      %p121 = scmp.eq.s32.totalorder %s26, 1
      %p122 = por %p120, %p121
      %p124 = scmp.ne.s32.totalorder %s107, %s123
      %p125 = scmp.eq.s32.totalorder %s26, 0
      %p126 = por %p124, %p125
      %s127 = ssub.s32 %s20, %s27
      %p128 = scmp.eq.s32.totalorder %s127, 0
      %s130 = sadd.s32 %s129, 1
      %s131 = scalar_select %p128, %s129, %s130
      %p134 = pneg %p128
      %p135 = scmp.eq.s32.totalorder %s20, 1
      %p136 = por %p134, %p135
      %p137 = scmp.ne.s32.totalorder %s129, %s132
      %p138 = scmp.eq.s32.totalorder %s20, 0
      %p139 = por %p137, %p138
      %p140 = scmp.ne.s32.totalorder %s129, %s132
      %p141 = scmp.eq.s32.totalorder %s25, 1
      %p142 = por %p140, %p141
      %p143 = scmp.ne.s32.totalorder %s132, %s133
      %p144 = scmp.eq.s32.totalorder %s25, 0
      %p145 = por %p143, %p144
      %p146 = scmp.ne.s32.totalorder %s132, %s133
      %p147 = scmp.eq.s32.totalorder %s26, 1
      %p148 = por %p146, %p147
      %p150 = scmp.ne.s32.totalorder %s133, %s149
      %p151 = scmp.eq.s32.totalorder %s26, 0
      %p152 = por %p150, %p151
      %s153 = ssub.s32 %s20, %s27
      %p154 = scmp.eq.s32.totalorder %s153, 0
      %s156 = sadd.s32 %s155, 1
      %s157 = scalar_select %p154, %s155, %s156
      %p160 = pneg %p154
      %p161 = scmp.eq.s32.totalorder %s20, 1
      %p162 = por %p160, %p161
      %p163 = scmp.ne.s32.totalorder %s155, %s158
      %p164 = scmp.eq.s32.totalorder %s20, 0
      %p165 = por %p163, %p164
      %p166 = scmp.ne.s32.totalorder %s155, %s158
      %p167 = scmp.eq.s32.totalorder %s25, 1
      %p168 = por %p166, %p167
      %p169 = scmp.ne.s32.totalorder %s158, %s159
      %p170 = scmp.eq.s32.totalorder %s25, 0
      %p171 = por %p169, %p170
      %p172 = scmp.ne.s32.totalorder %s158, %s159
      %p173 = scmp.eq.s32.totalorder %s26, 1
      %p174 = por %p172, %p173
      %p176 = scmp.ne.s32.totalorder %s159, %s175
      %p177 = scmp.eq.s32.totalorder %s26, 0
      %p178 = por %p176, %p177
      %s179 = ssub.s32 %s20, %s27
      %p180 = scmp.eq.s32.totalorder %s179, 0
      %s182 = sadd.s32 %s181, 1
      %s183 = scalar_select %p180, %s181, %s182
      %p186 = pneg %p180
      %p187 = scmp.eq.s32.totalorder %s20, 1
      %p188 = por %p186, %p187
      %p189 = scmp.ne.s32.totalorder %s181, %s184
      %p190 = scmp.eq.s32.totalorder %s20, 0
      %p191 = por %p189, %p190
      %p192 = scmp.ne.s32.totalorder %s181, %s184
      %p193 = scmp.eq.s32.totalorder %s25, 1
      %p194 = por %p192, %p193
      %p195 = scmp.ne.s32.totalorder %s184, %s185
      %p196 = scmp.eq.s32.totalorder %s25, 0
      %p197 = por %p195, %p196
      %p198 = scmp.ne.s32.totalorder %s184, %s185
      %p199 = scmp.eq.s32.totalorder %s26, 1
      %p200 = por %p198, %p199
      %p202 = scmp.ne.s32.totalorder %s185, %s201
      %p203 = scmp.eq.s32.totalorder %s26, 0
      %p204 = por %p202, %p203
      %s205 = ssub.s32 %s20, %s27
      %p206 = scmp.eq.s32.totalorder %s205, 0
      %s208 = sadd.s32 %s207, 1
      %s209 = scalar_select %p206, %s207, %s208
      %p212 = pneg %p206
      %p213 = scmp.eq.s32.totalorder %s20, 1
      %p214 = por %p212, %p213
      %p215 = scmp.ne.s32.totalorder %s207, %s210
      %p216 = scmp.eq.s32.totalorder %s20, 0
      %p217 = por %p215, %p216
      %p218 = scmp.ne.s32.totalorder %s207, %s210
      %p219 = scmp.eq.s32.totalorder %s25, 1
      %p220 = por %p218, %p219
      %p221 = scmp.ne.s32.totalorder %s210, %s211
      %p222 = scmp.eq.s32.totalorder %s25, 0
      %p223 = por %p221, %p222
      %p224 = scmp.ne.s32.totalorder %s210, %s211
      %p225 = scmp.eq.s32.totalorder %s26, 1
      %p226 = por %p224, %p225
      %p228 = scmp.ne.s32.totalorder %s211, %s227
      %p229 = scmp.eq.s32.totalorder %s26, 0
      %p230 = por %p228, %p229
      %p231 = scmp.le.s32.totalorder 1, %s20
      %p232 = scmp.lt.s32.totalorder %s20, 3
      %p233 = pnand %p231, %p232
      %p234 = pneg %p233
      // Predicated region
      $region9: #{tpu_custom_call.1} parent=5 // pred_check
        _
      $region10: #{tpu_custom_call.1} parent=5 // pred_check_branch
        %236 = sbr.rel (%p233) target = $region12
      $region11: #{tpu_custom_call.1} parent=5 // pred_region
        %s237 = ssub.s32 %s20, 1
        // Predicated region
        $region13: #{tpu_custom_call.1} parent=11 // pred_check
          %p238 = pneg %p41
        $region14: #{tpu_custom_call.1} parent=11 // pred_check_branch
          %240 = sbr.rel (%p238) target = $region16
        $region15: #{tpu_custom_call.1} parent=11 // pred_region
          %s242 = ssub.s32 128, 128
          %243 = vsyncadd [#allocation3], %s242
          %s245 = sshll.u32 [#allocation2], 4
          %s246 = int_to_ptr.vmem [resolvable:$true] %s245
          %248 = dma.hbm_to_vmem [thread:$0]  %s0, 128, %s246, [#allocation3]
        $region16: #{tpu_custom_call.1} parent=11 // pred_fallthru
          _
      $region12: #{tpu_custom_call.1} parent=5 // pred_fallthru
        _
      %p249 = scmp.lt.s32.totalorder %s20, 2
      // Predicated region
      $region17: #{tpu_custom_call.1} parent=5 // pred_check
        %p250 = pneg %p249
      $region18: #{tpu_custom_call.1} parent=5 // pred_check_branch
        %252 = sbr.rel (%p250) target = $region20
      $region19: #{tpu_custom_call.1} parent=5 // pred_region
        // Predicated region
        $region21: #{tpu_custom_call.1} parent=19 // pred_check
          %p253 = pneg %p61
        $region22: #{tpu_custom_call.1} parent=19 // pred_check_branch
          %255 = sbr.rel (%p253) target = $region24
        $region23: #{tpu_custom_call.1} parent=19 // pred_region
          %s256 = smul.u32 2, %s20
          %p257 = scmp.lt.s32.totalorder %s256, 3
          %s258 = scalar_select %p257, %s256, 3
          %s259 = smul.addr %s258, 2
          %s260 = smul.addr %s259, 4
          %s261 = scalar_lea.vmem %s1, %s260
          %s262 = smul.u32 2, %s20
        $region24: #{tpu_custom_call.1} parent=19 // pred_fallthru
          _
        // Predicated region
        $region25: #{tpu_custom_call.1} parent=19 // pred_check
          %p263 = pneg %p87
        $region26: #{tpu_custom_call.1} parent=19 // pred_check_branch
          %265 = sbr.rel (%p263) target = $region28
        $region27: #{tpu_custom_call.1} parent=19 // pred_region
          %s266 = sand.u32 %s77, 1
          %s267 = scalar_lea.sflag [#allocation6], %s266
          %s268 = sand.u32 %s77, 1
          %s269 = smul.addr %s268, 2
          %s270 = scalar_lea.vmem [#allocation5], %s269
          %s271 = smul.u32 2, %s20
          %s273 = ssub.s32 32, 32
          %274 = vsyncadd %s267, %s273
          %s275 = smul.addr %s271, 16
          %s276 = scalar_lea.hbm %s2, %s275
          %s277 = sshll.u32 %s270, 4
          %s278 = int_to_ptr.vmem [resolvable:$true] %s277
          %283 = dma.hbm_to_vmem [thread:$0]  %s276, 32, %s278, %s267, 16, 16, 1
        $region28: #{tpu_custom_call.1} parent=19 // pred_fallthru
          _
        // Predicated region
        $region29: #{tpu_custom_call.1} parent=19 // pred_check
          %p284 = pneg %p113
        $region30: #{tpu_custom_call.1} parent=19 // pred_check_branch
          %286 = sbr.rel (%p284) target = $region32
        $region31: #{tpu_custom_call.1} parent=19 // pred_region
          %s287 = smul.u32 2, %s20
          %p288 = scmp.lt.s32.totalorder %s287, 3
          %s289 = scalar_select %p288, %s287, 3
          %s290 = smul.addr %s289, 4
          %s291 = smul.addr %s290, 4
          %s292 = scalar_lea.vmem %s3, %s291
          %s293 = smul.u32 2, %s20
        $region32: #{tpu_custom_call.1} parent=19 // pred_fallthru
          _
        // Predicated region
        $region33: #{tpu_custom_call.1} parent=19 // pred_check
          %p294 = pneg %p139
        $region34: #{tpu_custom_call.1} parent=19 // pred_check_branch
          %296 = sbr.rel (%p294) target = $region36
        $region35: #{tpu_custom_call.1} parent=19 // pred_region
          %s297 = smul.u32 2, %s20
          %p298 = scmp.lt.s32.totalorder %s297, 3
          %s299 = scalar_select %p298, %s297, 3
          %s300 = scalar_lea.vmem %s4, %s299
          %s301 = smul.u32 2, %s20
        $region36: #{tpu_custom_call.1} parent=19 // pred_fallthru
          _
        // Predicated region
        $region37: #{tpu_custom_call.1} parent=19 // pred_check
          %p302 = pneg %p165
        $region38: #{tpu_custom_call.1} parent=19 // pred_check_branch
          %304 = sbr.rel (%p302) target = $region40
        $region39: #{tpu_custom_call.1} parent=19 // pred_region
          %s305 = smul.u32 2, %s20
          %p306 = scmp.lt.s32.totalorder %s305, 3
          %s307 = scalar_select %p306, %s305, 3
          %s308 = smul.addr %s307, 4
          %s309 = smul.addr %s308, 4
          %s310 = scalar_lea.vmem %s5, %s309
          %s311 = smul.u32 2, %s20
        $region40: #{tpu_custom_call.1} parent=19 // pred_fallthru
          _
        // Predicated region
        $region41: #{tpu_custom_call.1} parent=19 // pred_check
          %p312 = pneg %p191
        $region42: #{tpu_custom_call.1} parent=19 // pred_check_branch
          %314 = sbr.rel (%p312) target = $region44
        $region43: #{tpu_custom_call.1} parent=19 // pred_region
          %s315 = smul.u32 2, %s20
          %p316 = scmp.lt.s32.totalorder %s315, 3
          %s317 = scalar_select %p316, %s315, 3
          %s318 = scalar_lea.vmem %s6, %s317
          %s319 = smul.u32 2, %s20
        $region44: #{tpu_custom_call.1} parent=19 // pred_fallthru
          _
      $region20: #{tpu_custom_call.1} parent=5 // pred_fallthru
        _
      %p320 = scmp.le.s32.totalorder 1, %s20
      %p321 = scmp.lt.s32.totalorder %s20, 3
      %p322 = pnand %p320, %p321
      %p323 = pneg %p322
      // Predicated region
      $region45: #{tpu_custom_call.1} parent=5 // pred_check
        _
      $region46: #{tpu_custom_call.1} parent=5 // pred_check_branch
        %325 = sbr.rel (%p322) target = $region48
      $region47: #{tpu_custom_call.1} parent=5 // pred_region
        %s326 = ssub.s32 %s20, 1
        // Predicated region
        $region49: #{tpu_custom_call.1} parent=47 // pred_check
          %p327 = pneg %p41
        $region50: #{tpu_custom_call.1} parent=47 // pred_check_branch
          %329 = sbr.rel (%p327) target = $region52
        $region51: #{tpu_custom_call.1} parent=47 // pred_region
          %330 = dma.done [#allocation3], 128
        $region52: #{tpu_custom_call.1} parent=47 // pred_fallthru
          _
        %s331 = sand.u32 %s80, 1
        %s332 = scalar_lea.sflag [#allocation6], %s331
        %s333 = sand.u32 %s80, 1
        %s334 = smul.addr %s333, 2
        %s335 = scalar_lea.vmem [#allocation5], %s334
        // Predicated region
        $region53: #{tpu_custom_call.1} parent=47 // pred_check
          %p336 = pneg %p93
        $region54: #{tpu_custom_call.1} parent=47 // pred_check_branch
          %338 = sbr.rel (%p336) target = $region56
        $region55: #{tpu_custom_call.1} parent=47 // pred_region
          %339 = dma.done %s332, 32
        $region56: #{tpu_custom_call.1} parent=47 // pred_fallthru
          _
        %p340 = pneg %p41
        %p341 = pneg %p38
        %s342 = smul.u32 2, %s25
        %p343 = scmp.lt.s32.totalorder %s342, 3
        %s344 = scalar_select %p343, %s342, 3
        %s345 = smul.addr %s344, 2
        %s346 = smul.addr %s345, 4
        %s347 = scalar_lea.vmem %s1, %s346
        %p348 = pneg %p67
        %p349 = pneg %p64
        %s350 = sand.u32 %s80, 1
        %s351 = scalar_lea.sflag [#allocation6], %s350
        %s352 = sand.u32 %s80, 1
        %s353 = smul.addr %s352, 2
        %s354 = scalar_lea.vmem [#allocation5], %s353
        %p355 = pneg %p93
        %p356 = pneg %p90
        %s357 = smul.u32 2, %s25
        %p358 = scmp.lt.s32.totalorder %s357, 3
        %s359 = scalar_select %p358, %s357, 3
        %s360 = smul.addr %s359, 4
        %s361 = smul.addr %s360, 4
        %s362 = scalar_lea.vmem %s3, %s361
        %p363 = pneg %p119
        %p364 = pneg %p116
        %s365 = smul.u32 2, %s25
        %p366 = scmp.lt.s32.totalorder %s365, 3
        %s367 = scalar_select %p366, %s365, 3
        %s368 = scalar_lea.vmem %s4, %s367
        %p369 = pneg %p145
        %p370 = pneg %p142
        %s371 = smul.u32 2, %s25
        %p372 = scmp.lt.s32.totalorder %s371, 3
        %s373 = scalar_select %p372, %s371, 3
        %s374 = smul.addr %s373, 4
        %s375 = smul.addr %s374, 4
        %s376 = scalar_lea.vmem %s5, %s375
        %p377 = pneg %p171
        %p378 = pneg %p168
        %s379 = smul.u32 2, %s25
        %p380 = scmp.lt.s32.totalorder %s379, 3
        %s381 = scalar_select %p380, %s379, 3
        %s382 = scalar_lea.vmem %s6, %s381
        %p383 = pneg %p197
        %p384 = pneg %p194
        %p385 = pneg %p223
        %p386 = pneg %p220
        %s387 = sand.u32 %s210, 1
        %s388 = scalar_lea.sflag [#allocation4], %s387
        %s389 = sand.u32 %s210, 1
        %s390 = smul.addr %s389, 16
        %s391 = scalar_lea.vmem [#allocation7], %s390
        %s392 = smul.u32 2, %s25
        %p393 = scmp.lt.s32.totalorder %s392, 3
        %s394 = scalar_select %p393, %s392, 3
        %s395 = smul.addr %s394, 2
        %s396 = smul.addr %s395, 4
        %s397 = scalar_lea.vmem %s1, %s396
        %s398 = smul.u32 2, %s25
        %s399 = smul.u32 2, %s25
        %s400 = smul.u32 2, %s25
        %p401 = scmp.lt.s32.totalorder %s400, 3
        %s402 = scalar_select %p401, %s400, 3
        %s403 = smul.addr %s402, 4
        %s404 = smul.addr %s403, 4
        %s405 = scalar_lea.vmem %s3, %s404
        %s406 = smul.u32 2, %s25
        %s407 = smul.u32 2, %s25
        %p408 = scmp.lt.s32.totalorder %s407, 3
        %s409 = scalar_select %p408, %s407, 3
        %s410 = scalar_lea.vmem %s4, %s409
        %s411 = smul.u32 2, %s25
        %s412 = smul.u32 2, %s25
        %p413 = scmp.lt.s32.totalorder %s412, 3
        %s414 = scalar_select %p413, %s412, 3
        %s415 = smul.addr %s414, 4
        %s416 = smul.addr %s415, 4
        %s417 = scalar_lea.vmem %s5, %s416
        %s418 = smul.u32 2, %s25
        %s419 = smul.u32 2, %s25
        %p420 = scmp.lt.s32.totalorder %s419, 3
        %s421 = scalar_select %p420, %s419, 3
        %s422 = scalar_lea.vmem %s6, %s421
        %s423 = smul.u32 2, %s25
        %s424 = smul.u32 2, %s25
        %v426 = vld [vmem:[#allocation2] sm:$0xff]
        %v427 = vpack.c.bf16 %v426, %v426
        %v428 = vlaneseq
        %v429 = vand.u32 %v428, 127
        %vm430 = vcmp.lt.s32.totalorder %v429, 6
        %v431 = vld [vmem:[%s397] sm:$0xf]
        %v432 = vld [vmem:[%s397 + $0x4] sm:$0xf]
        %v433 = vld [vmem:[%s335] sm:$0x1]
        %v435 = vlaneseq
        %v436 = vshrl.u32 %v435, 7
        %v437 = vsub.s32 0, %v436
        %v438 = vrot.slane %v433, %v437
        %v442 = vunpack.c.l.b16 %v431
        %v443 = vunpack.c.l.b16 %v432
        %v444 = vpack.c.b16 %v443, %v442
        %vm446 = vcmask 130048
        %v448 = vsel %vm446, %v427, 0
        %450 = vmatprep.subr.bf16.mxu0 0
        %451 = vmatpush1.bf16.msra.mxu0 %v444
        %452 = vmatprep.subr.bf16.mxu0 0
        %453 = vmatpush1.bf16.msra.mxu0 0
        %454 = vmatprep.subr.bf16.mxu0 0
        %455 = vmatpush1.bf16.msra.mxu0 0
        %456 = vmatprep.subr.bf16.mxu0 0
        %457 = vmatpush1.bf16.msra.mxu0 0
        %458 = vmatprep.subr.bf16.mxu0 0
        %459 = vmatpush1.bf16.msra.mxu0 0
        %460 = vmatprep.subr.bf16.mxu0 0
        %461 = vmatpush1.bf16.msra.mxu0 0
        %462 = vmatprep.subr.bf16.mxu0 0
        %463 = vmatpush1.bf16.msra.mxu0 0
        %464 = vmatprep.subr.bf16.mxu0 0
        %465 = vmatpush1.bf16.msra.mxu0 0
        %466 = vmatprep.subr.bf16.mxu0 0
        %467 = vmatpush1.bf16.msra.mxu0 0
        %468 = vmatprep.subr.bf16.mxu0 0
        %469 = vmatpush1.bf16.msra.mxu0 0
        %470 = vmatprep.subr.bf16.mxu0 0
        %471 = vmatpush1.bf16.msra.mxu0 0
        %472 = vmatprep.subr.bf16.mxu0 0
        %473 = vmatpush1.bf16.msra.mxu0 0
        %474 = vmatprep.subr.bf16.mxu0 0
        %475 = vmatpush1.bf16.msra.mxu0 0
        %476 = vmatprep.subr.bf16.mxu0 0
        %477 = vmatpush1.bf16.msra.mxu0 0
        %478 = vmatprep.subr.bf16.mxu0 0
        %479 = vmatpush1.bf16.msra.mxu0 0
        %480 = vmatprep.subr.bf16.mxu0 0
        %481 = vmatpush1.bf16.msra.mxu0 0
        %482 = vmatprep.mubr.bf16.mxu0 0
        %483 = vmatmul.mubr.bf16.gmra.mrb[0].mxu0 %v448
        %v484 = vpop.f32.mrb[0].mxu0
        %v485 = vadd.f32 %v438, %v484
        %v486 = vpop.f32.mrb[0].mxu0
        %v487 = vpop.f32.mrb[0].mxu0
        %v488 = vpop.f32.mrb[0].mxu0
        %489 = vdwg.mxu0
        %v490 = vmax.f32 %v485, 0.0
        %v491 = vpack.c.bf16 %v490, %v490
        %v492 = vld [vmem:[%s405] sm:$0xf]
        %v493 = vld [vmem:[%s405 + $0x4] sm:$0xf]
        %v494 = vld [vmem:[%s405 + $0x8] sm:$0xf]
        %v495 = vld [vmem:[%s405 + $0xc] sm:$0xf]
        %v496 = vld [vmem:[%s410] sm:$0x1]
        %v498 = vlaneseq
        %v499 = vshrl.u32 %v498, 7
        %v500 = vsub.s32 0, %v499
        %v501 = vrot.slane %v496, %v500
        %v507 = vunpack.c.l.b16 %v492
        %v508 = vunpack.c.l.b16 %v493
        %v509 = vunpack.c.l.b16 %v494
        %v510 = vunpack.c.l.b16 %v495
        %v511 = vpack.c.b16 %v508, %v507
        %v512 = vpack.c.b16 %v510, %v509
        %vm515 = vcmask 261120
        %v517 = vsel %vm515, %v491, 0
        %519 = vmatprep.subr.bf16.mxu0 0
        %520 = vmatpush1.bf16.msra.mxu0 %v511
        %521 = vmatprep.subr.bf16.mxu0 0
        %522 = vmatpush1.bf16.msra.mxu0 %v512
        %523 = vmatprep.subr.bf16.mxu0 0
        %524 = vmatpush1.bf16.msra.mxu0 0
        %525 = vmatprep.subr.bf16.mxu0 0
        %526 = vmatpush1.bf16.msra.mxu0 0
        %527 = vmatprep.subr.bf16.mxu0 0
        %528 = vmatpush1.bf16.msra.mxu0 0
        %529 = vmatprep.subr.bf16.mxu0 0
        %530 = vmatpush1.bf16.msra.mxu0 0
        %531 = vmatprep.subr.bf16.mxu0 0
        %532 = vmatpush1.bf16.msra.mxu0 0
        %533 = vmatprep.subr.bf16.mxu0 0
        %534 = vmatpush1.bf16.msra.mxu0 0
        %535 = vmatprep.subr.bf16.mxu0 0
        %536 = vmatpush1.bf16.msra.mxu0 0
        %537 = vmatprep.subr.bf16.mxu0 0
        %538 = vmatpush1.bf16.msra.mxu0 0
        %539 = vmatprep.subr.bf16.mxu0 0
        %540 = vmatpush1.bf16.msra.mxu0 0
        %541 = vmatprep.subr.bf16.mxu0 0
        %542 = vmatpush1.bf16.msra.mxu0 0
        %543 = vmatprep.subr.bf16.mxu0 0
        %544 = vmatpush1.bf16.msra.mxu0 0
        %545 = vmatprep.subr.bf16.mxu0 0
        %546 = vmatpush1.bf16.msra.mxu0 0
        %547 = vmatprep.subr.bf16.mxu0 0
        %548 = vmatpush1.bf16.msra.mxu0 0
        %549 = vmatprep.subr.bf16.mxu0 0
        %550 = vmatpush1.bf16.msra.mxu0 0
        %551 = vmatprep.mubr.bf16.mxu0 0
        %552 = vmatmul.mubr.bf16.gmra.mrb[0].mxu0 %v517
        %v553 = vpop.f32.mrb[0].mxu0
        %v554 = vadd.f32 %v501, %v553
        %v555 = vpop.f32.mrb[0].mxu0
        %v556 = vpop.f32.mrb[0].mxu0
        %v557 = vpop.f32.mrb[0].mxu0
        %558 = vdwg.mxu0
        %v559 = vmax.f32 %v554, 0.0
        %v560 = vpack.c.bf16 %v559, %v559
        %v561 = vld [vmem:[%s417] sm:$0xf]
        %v562 = vld [vmem:[%s417 + $0x4] sm:$0xf]
        %v563 = vld [vmem:[%s417 + $0x8] sm:$0xf]
        %v564 = vld [vmem:[%s417 + $0xc] sm:$0xf]
        %v565 = vld [vmem:[%s422] sm:$0x1]
        %v567 = vlaneseq
        %v568 = vshrl.u32 %v567, 7
        %v569 = vsub.s32 0, %v568
        %v570 = vrot.slane %v565, %v569
        %v576 = vunpack.c.l.b16 %v561
        %v577 = vunpack.c.l.b16 %v562
        %v578 = vunpack.c.l.b16 %v563
        %v579 = vunpack.c.l.b16 %v564
        %v580 = vpack.c.b16 %v577, %v576
        %v581 = vpack.c.b16 %v579, %v578
        %v585 = vsel %vm515, %v560, 0
        %587 = vmatprep.subr.bf16.mxu0 0
        %588 = vmatpush1.bf16.msra.mxu0 %v580
        %589 = vmatprep.subr.bf16.mxu0 0
        %590 = vmatpush1.bf16.msra.mxu0 %v581
        %591 = vmatprep.subr.bf16.mxu0 0
        %592 = vmatpush1.bf16.msra.mxu0 0
        %593 = vmatprep.subr.bf16.mxu0 0
        %594 = vmatpush1.bf16.msra.mxu0 0
        %595 = vmatprep.subr.bf16.mxu0 0
        %596 = vmatpush1.bf16.msra.mxu0 0
        %597 = vmatprep.subr.bf16.mxu0 0
        %598 = vmatpush1.bf16.msra.mxu0 0
        %599 = vmatprep.subr.bf16.mxu0 0
        %600 = vmatpush1.bf16.msra.mxu0 0
        %601 = vmatprep.subr.bf16.mxu0 0
        %602 = vmatpush1.bf16.msra.mxu0 0
        %603 = vmatprep.subr.bf16.mxu0 0
        %604 = vmatpush1.bf16.msra.mxu0 0
        %605 = vmatprep.subr.bf16.mxu0 0
        %606 = vmatpush1.bf16.msra.mxu0 0
        %607 = vmatprep.subr.bf16.mxu0 0
        %608 = vmatpush1.bf16.msra.mxu0 0
        %609 = vmatprep.subr.bf16.mxu0 0
        %610 = vmatpush1.bf16.msra.mxu0 0
        %611 = vmatprep.subr.bf16.mxu0 0
        %612 = vmatpush1.bf16.msra.mxu0 0
        %613 = vmatprep.subr.bf16.mxu0 0
        %614 = vmatpush1.bf16.msra.mxu0 0
        %615 = vmatprep.subr.bf16.mxu0 0
        %616 = vmatpush1.bf16.msra.mxu0 0
        %617 = vmatprep.subr.bf16.mxu0 0
        %618 = vmatpush1.bf16.msra.mxu0 0
        %619 = vmatprep.mubr.bf16.mxu0 0
        %620 = vmatmul.mubr.bf16.gmra.mrb[0].mxu0 %v585
        %v621 = vpop.f32.mrb[0].mxu0
        %v622 = vadd.f32 %v570, %v621
        %v623 = vpop.f32.mrb[0].mxu0
        %v624 = vpop.f32.mrb[0].mxu0
        %v625 = vpop.f32.mrb[0].mxu0
        %626 = vdwg.mxu0
        %v627 = vmax.f32 %v622, -20.0
        %v628 = vmin.f32 %v627, 2.0
        %v629 = vmul.f32 %v628, 1.442695
        %v630 = vpow.pop %v629
        %v631 = vsel %vm430, %v622, %v630
        %vm632 = vcmask 97280
        %633 = vst.msk [vmem:[%s391] sm:$0xff] %vm632, %v631
        %s634 = scalar_lea.vmem %s397, 8
        %v635 = vld [vmem:[%s634] sm:$0xf]
        %v636 = vld [vmem:[%s634 + $0x4] sm:$0xf]
        %s637 = scalar_lea.vmem %s335, 1 [#allocation5]
        %v638 = vld [vmem:[%s637] sm:$0x1]
        %v640 = vlaneseq
        %v641 = vshrl.u32 %v640, 7
        %v642 = vsub.s32 0, %v641
        %v643 = vrot.slane %v638, %v642
        %v647 = vunpack.c.l.b16 %v635
        %v648 = vunpack.c.l.b16 %v636
        %v649 = vpack.c.b16 %v648, %v647
        %651 = vmatprep.subr.bf16.mxu0 0
        %652 = vmatpush1.bf16.msra.mxu0 %v649
        %653 = vmatprep.subr.bf16.mxu0 0
        %654 = vmatpush1.bf16.msra.mxu0 0
        %655 = vmatprep.subr.bf16.mxu0 0
        %656 = vmatpush1.bf16.msra.mxu0 0
        %657 = vmatprep.subr.bf16.mxu0 0
        %658 = vmatpush1.bf16.msra.mxu0 0
        %659 = vmatprep.subr.bf16.mxu0 0
        %660 = vmatpush1.bf16.msra.mxu0 0
        %661 = vmatprep.subr.bf16.mxu0 0
        %662 = vmatpush1.bf16.msra.mxu0 0
        %663 = vmatprep.subr.bf16.mxu0 0
        %664 = vmatpush1.bf16.msra.mxu0 0
        %665 = vmatprep.subr.bf16.mxu0 0
        %666 = vmatpush1.bf16.msra.mxu0 0
        %667 = vmatprep.subr.bf16.mxu0 0
        %668 = vmatpush1.bf16.msra.mxu0 0
        %669 = vmatprep.subr.bf16.mxu0 0
        %670 = vmatpush1.bf16.msra.mxu0 0
        %671 = vmatprep.subr.bf16.mxu0 0
        %672 = vmatpush1.bf16.msra.mxu0 0
        %673 = vmatprep.subr.bf16.mxu0 0
        %674 = vmatpush1.bf16.msra.mxu0 0
        %675 = vmatprep.subr.bf16.mxu0 0
        %676 = vmatpush1.bf16.msra.mxu0 0
        %677 = vmatprep.subr.bf16.mxu0 0
        %678 = vmatpush1.bf16.msra.mxu0 0
        %679 = vmatprep.subr.bf16.mxu0 0
        %680 = vmatpush1.bf16.msra.mxu0 0
        %681 = vmatprep.subr.bf16.mxu0 0
        %682 = vmatpush1.bf16.msra.mxu0 0
        %683 = vmatprep.mubr.bf16.mxu0 0
        %684 = vmatmul.mubr.bf16.gmra.mrb[0].mxu0 %v448
        %v685 = vpop.f32.mrb[0].mxu0
        %v686 = vadd.f32 %v643, %v685
        %v687 = vpop.f32.mrb[0].mxu0
        %v688 = vpop.f32.mrb[0].mxu0
        %v689 = vpop.f32.mrb[0].mxu0
        %690 = vdwg.mxu0
        %v691 = vmax.f32 %v686, 0.0
        %v692 = vpack.c.bf16 %v691, %v691
        %s693 = scalar_lea.vmem %s405, 16
        %v694 = vld [vmem:[%s693] sm:$0xf]
        %v695 = vld [vmem:[%s693 + $0x4] sm:$0xf]
        %v696 = vld [vmem:[%s693 + $0x8] sm:$0xf]
        %v697 = vld [vmem:[%s693 + $0xc] sm:$0xf]
        %s698 = scalar_lea.vmem %s410, 1
        %v699 = vld [vmem:[%s698] sm:$0x1]
        %v701 = vlaneseq
        %v702 = vshrl.u32 %v701, 7
        %v703 = vsub.s32 0, %v702
        %v704 = vrot.slane %v699, %v703
        %v710 = vunpack.c.l.b16 %v694
        %v711 = vunpack.c.l.b16 %v695
        %v712 = vunpack.c.l.b16 %v696
        %v713 = vunpack.c.l.b16 %v697
        %v714 = vpack.c.b16 %v711, %v710
        %v715 = vpack.c.b16 %v713, %v712
        %v719 = vsel %vm515, %v692, 0
        %721 = vmatprep.subr.bf16.mxu0 0
        %722 = vmatpush1.bf16.msra.mxu0 %v714
        %723 = vmatprep.subr.bf16.mxu0 0
        %724 = vmatpush1.bf16.msra.mxu0 %v715
        %725 = vmatprep.subr.bf16.mxu0 0
        %726 = vmatpush1.bf16.msra.mxu0 0
        %727 = vmatprep.subr.bf16.mxu0 0
        %728 = vmatpush1.bf16.msra.mxu0 0
        %729 = vmatprep.subr.bf16.mxu0 0
        %730 = vmatpush1.bf16.msra.mxu0 0
        %731 = vmatprep.subr.bf16.mxu0 0
        %732 = vmatpush1.bf16.msra.mxu0 0
        %733 = vmatprep.subr.bf16.mxu0 0
        %734 = vmatpush1.bf16.msra.mxu0 0
        %735 = vmatprep.subr.bf16.mxu0 0
        %736 = vmatpush1.bf16.msra.mxu0 0
        %737 = vmatprep.subr.bf16.mxu0 0
        %738 = vmatpush1.bf16.msra.mxu0 0
        %739 = vmatprep.subr.bf16.mxu0 0
        %740 = vmatpush1.bf16.msra.mxu0 0
        %741 = vmatprep.subr.bf16.mxu0 0
        %742 = vmatpush1.bf16.msra.mxu0 0
        %743 = vmatprep.subr.bf16.mxu0 0
        %744 = vmatpush1.bf16.msra.mxu0 0
        %745 = vmatprep.subr.bf16.mxu0 0
        %746 = vmatpush1.bf16.msra.mxu0 0
        %747 = vmatprep.subr.bf16.mxu0 0
        %748 = vmatpush1.bf16.msra.mxu0 0
        %749 = vmatprep.subr.bf16.mxu0 0
        %750 = vmatpush1.bf16.msra.mxu0 0
        %751 = vmatprep.subr.bf16.mxu0 0
        %752 = vmatpush1.bf16.msra.mxu0 0
        %753 = vmatprep.mubr.bf16.mxu0 0
        %754 = vmatmul.mubr.bf16.gmra.mrb[0].mxu0 %v719
        %v755 = vpop.f32.mrb[0].mxu0
        %v756 = vadd.f32 %v704, %v755
        %v757 = vpop.f32.mrb[0].mxu0
        %v758 = vpop.f32.mrb[0].mxu0
        %v759 = vpop.f32.mrb[0].mxu0
        %760 = vdwg.mxu0
        %v761 = vmax.f32 %v756, 0.0
        %v762 = vpack.c.bf16 %v761, %v761
        %s763 = scalar_lea.vmem %s417, 16
        %v764 = vld [vmem:[%s763] sm:$0xf]
        %v765 = vld [vmem:[%s763 + $0x4] sm:$0xf]
        %v766 = vld [vmem:[%s763 + $0x8] sm:$0xf]
        %v767 = vld [vmem:[%s763 + $0xc] sm:$0xf]
        %s768 = scalar_lea.vmem %s422, 1
        %v769 = vld [vmem:[%s768] sm:$0x1]
        %v771 = vlaneseq
        %v772 = vshrl.u32 %v771, 7
        %v773 = vsub.s32 0, %v772
        %v774 = vrot.slane %v769, %v773
        %v780 = vunpack.c.l.b16 %v764
        %v781 = vunpack.c.l.b16 %v765
        %v782 = vunpack.c.l.b16 %v766
        %v783 = vunpack.c.l.b16 %v767
        %v784 = vpack.c.b16 %v781, %v780
        %v785 = vpack.c.b16 %v783, %v782
        %v789 = vsel %vm515, %v762, 0
        %791 = vmatprep.subr.bf16.mxu0 0
        %792 = vmatpush1.bf16.msra.mxu0 %v784
        %793 = vmatprep.subr.bf16.mxu0 0
        %794 = vmatpush1.bf16.msra.mxu0 %v785
        %795 = vmatprep.subr.bf16.mxu0 0
        %796 = vmatpush1.bf16.msra.mxu0 0
        %797 = vmatprep.subr.bf16.mxu0 0
        %798 = vmatpush1.bf16.msra.mxu0 0
        %799 = vmatprep.subr.bf16.mxu0 0
        %800 = vmatpush1.bf16.msra.mxu0 0
        %801 = vmatprep.subr.bf16.mxu0 0
        %802 = vmatpush1.bf16.msra.mxu0 0
        %803 = vmatprep.subr.bf16.mxu0 0
        %804 = vmatpush1.bf16.msra.mxu0 0
        %805 = vmatprep.subr.bf16.mxu0 0
        %806 = vmatpush1.bf16.msra.mxu0 0
        %807 = vmatprep.subr.bf16.mxu0 0
        %808 = vmatpush1.bf16.msra.mxu0 0
        %809 = vmatprep.subr.bf16.mxu0 0
        %810 = vmatpush1.bf16.msra.mxu0 0
        %811 = vmatprep.subr.bf16.mxu0 0
        %812 = vmatpush1.bf16.msra.mxu0 0
        %813 = vmatprep.subr.bf16.mxu0 0
        %814 = vmatpush1.bf16.msra.mxu0 0
        %815 = vmatprep.subr.bf16.mxu0 0
        %816 = vmatpush1.bf16.msra.mxu0 0
        %817 = vmatprep.subr.bf16.mxu0 0
        %818 = vmatpush1.bf16.msra.mxu0 0
        %819 = vmatprep.subr.bf16.mxu0 0
        %820 = vmatpush1.bf16.msra.mxu0 0
        %821 = vmatprep.subr.bf16.mxu0 0
        %822 = vmatpush1.bf16.msra.mxu0 0
        %823 = vmatprep.mubr.bf16.mxu0 0
        %824 = vmatmul.mubr.bf16.gmra.mrb[0].mxu0 %v789
        %v825 = vpop.f32.mrb[0].mxu0
        %v826 = vadd.f32 %v774, %v825
        %v827 = vpop.f32.mrb[0].mxu0
        %v828 = vpop.f32.mrb[0].mxu0
        %v829 = vpop.f32.mrb[0].mxu0
        %830 = vdwg.mxu0
        %v831 = vmax.f32 %v826, -20.0
        %v832 = vmin.f32 %v831, 2.0
        %v833 = vmul.f32 %v832, 1.442695
        %v834 = vpow.pop %v833
        %v835 = vsel %vm430, %v826, %v834
        %s836 = scalar_lea.vmem %s391, 8 [#allocation7]
        %837 = vst.msk [vmem:[%s836] sm:$0xff] %vm632, %v835
        %s838 = sand.u32 %s210, 1
        %s839 = scalar_lea.sflag [#allocation4], %s838
        %s840 = sand.u32 %s210, 1
        %s841 = smul.addr %s840, 16
        %s842 = scalar_lea.vmem [#allocation7], %s841
        // Predicated region
        $region57: #{tpu_custom_call.1} parent=47 // pred_check
          %p843 = pneg %p220
        $region58: #{tpu_custom_call.1} parent=47 // pred_check_branch
          %845 = sbr.rel (%p843) target = $region60
        $region59: #{tpu_custom_call.1} parent=47 // pred_region
          %s846 = smul.u32 2, %s25
          %s848 = ssub.s32 256, 256
          %849 = vsyncadd %s839, %s848
          %s850 = smul.addr %s846, 128
          %s851 = scalar_lea.hbm %s7, %s850
          %s852 = sshll.u32 %s842, 4
          %s853 = int_to_ptr.vmem [resolvable:$true] %s852
          %858 = dma.vmem_to_hbm [thread:$0]  %s853, 256, %s851, %s839, 128, 128, 8
        $region60: #{tpu_custom_call.1} parent=47 // pred_fallthru
          _
      $region48: #{tpu_custom_call.1} parent=5 // pred_fallthru
        _
      %p859 = scmp.le.s32.totalorder 2, %s20
      // Predicated region
      $region61: #{tpu_custom_call.1} parent=5 // pred_check
        %p860 = pneg %p859
      $region62: #{tpu_custom_call.1} parent=5 // pred_check_branch
        %862 = sbr.rel (%p860) target = $region64
      $region63: #{tpu_custom_call.1} parent=5 // pred_region
        %s863 = ssub.s32 %s20, 2
        // Predicated region
        $region65: #{tpu_custom_call.1} parent=63 // pred_check
          %p864 = pneg %p226
        $region66: #{tpu_custom_call.1} parent=63 // pred_check_branch
          %866 = sbr.rel (%p864) target = $region68
        $region67: #{tpu_custom_call.1} parent=63 // pred_region
          %s867 = sand.u32 %s211, 1
          %s868 = scalar_lea.sflag [#allocation4], %s867
          %s869 = sand.u32 %s211, 1
          %s870 = smul.addr %s869, 16
          %s871 = scalar_lea.vmem [#allocation7], %s870
          %872 = dma.done %s868, 256
        $region68: #{tpu_custom_call.1} parent=63 // pred_fallthru
          _
      $region64: #{tpu_custom_call.1} parent=5 // pred_fallthru
        _
    $region6: #{tpu_custom_call.1} parent=1 // loop_footer
      %s24 = sadd.s32 1, %s20
    $region7: #{tpu_custom_call.1} parent=1 // loop_footer_branch
      %19 = sbr.rel target = $region3
    $region8: #{tpu_custom_call.1} parent=1 // loop_exit
      _
    %873 = vsyncpa [#allocation3], 1
    %s874 = scalar_lea.sflag [#allocation3], 1
    %875 = vsyncpa %s874, 1
    %876 = vsyncpa [#allocation6], 1
    %s877 = scalar_lea.sflag [#allocation6], 1
    %878 = vsyncpa %s877, 1
    %879 = vsyncpa [#allocation4], 1
    %s880 = scalar_lea.sflag [#allocation4], 1
    %881 = vsyncpa %s880, 1

</llo_original>
